<compile_context>
chip_gen: v6e
topology: v6e:2x2x1
jax: 0.10.0
libtpu: 0.0.40
codegen_flags: <defaults>
</compile_context>

<pallas_src>
import jax
import jax.numpy as jnp
from jax.experimental import pallas as pl
from jax.experimental.pallas import tpu as pltpu


def _affine_kernel(x_ref, scale_ref, bias_ref, o_ref):
    # x_ref / o_ref: (BR, BL) lane-dense tile.
    # scale_ref / bias_ref: (BR, 1) per-row affine params (broadcast on VPU).
    x = x_ref[...].astype(jnp.float32)
    o_ref[...] = (x * scale_ref[...] + bias_ref[...]).astype(o_ref.dtype)


def _choose_blocks(rows, lanes, target_bytes=2 * 1024 * 1024, elem_bytes=4):
    """Pick (row_block, lane_block) obeying the (8, 128) tiling rule.

    Blocks are either full-extent along a dim or a multiple of (8, 128); sized
    to ~`target_bytes` per input tile so the pipeline stays near HBM roofline
    without blowing the (generation-dependent) scoped-VMEM budget.
    """
    # Lane (last) dim: keep it as wide as possible.
    if lanes * elem_bytes <= target_bytes:
        lane_block = lanes                                   # full dim -> legal
    else:
        lane_block = max(128, (target_bytes // elem_bytes) // 128 * 128)
        lane_block = min(lane_block, (lanes // 128) * 128)   # multiple of 128

    # Row (second-to-last) dim: fill the remaining byte budget.
    rows_budget = max(1, target_bytes // (lane_block * elem_bytes))
    if rows_budget >= rows:
        row_block = rows                                     # full dim -> legal
    else:
        row_block = min(max(8, (rows_budget // 8) * 8), rows)  # mult of 8 or R
    return row_block, lane_block


def image_transform_compose(images, target, mean, std):
    """Fused ConvertImageDtype(1/255) + Normalize(mean, std) pipeline.

    images: NCHW tensor (float32 in [0, 255] or uint8).
    target: arbitrary pytree, returned unchanged (matches the PyTorch module).
    Returns (normalized float32 images, target).
    """
    N, C, H, W = images.shape
    mean = jnp.asarray(mean, jnp.float32)
    std = jnp.asarray(std, jnp.float32)
    scale_c = (1.0 / (255.0 * std)).astype(jnp.float32)      # (C,)
    bias_c = (-mean / std).astype(jnp.float32)               # (C,)

    R, L = N * C, H * W
    out_dtype = jnp.float32

    # Lane-dense 2D layout: one row per (n, c) plane.
    x2d = images.reshape(R, L)
    scale_rows = jnp.broadcast_to(scale_c[None, :], (N, C)).reshape(R, 1)
    bias_rows = jnp.broadcast_to(bias_c[None, :], (N, C)).reshape(R, 1)

    row_blk, lane_blk = _choose_blocks(R, L)
    grid = (pl.cdiv(R, row_blk), pl.cdiv(L, lane_blk))

    # Donate the image buffer when dtypes match (pure same-shape elementwise op).
    io_aliases = {0: 0} if jnp.dtype(images.dtype) == jnp.dtype(out_dtype) else {}

    out2d = pl.pallas_call(
        _affine_kernel,
        out_shape=jax.ShapeDtypeStruct((R, L), out_dtype),
        grid=grid,
        in_specs=[
            pl.BlockSpec((row_blk, lane_blk), lambda i, j: (i, j)),
            pl.BlockSpec((row_blk, 1), lambda i, j: (i, 0)),
            pl.BlockSpec((row_blk, 1), lambda i, j: (i, 0)),
        ],
        out_specs=pl.BlockSpec((row_blk, lane_blk), lambda i, j: (i, j)),
        input_output_aliases=io_aliases,
        compiler_params=pltpu.CompilerParams(
            dimension_semantics=("parallel", "parallel")
        ),
    )(x2d, scale_rows, bias_rows)

    return out2d.reshape(N, C, H, W), target


if __name__ == "__main__":
    key = jax.random.PRNGKey(0)
    k_img, k_tgt = jax.random.split(key)

    N, C, H, W = 2, 4, 16, 16
    # "raw" image values in [0, 255], float32 NCHW
    images = jax.random.uniform(k_img, (N, C, H, W), jnp.float32, 0.0, 255.0)
    # dummy detection-style target (passes through unchanged)
    target = {"boxes": jax.random.uniform(k_tgt, (3, 4), jnp.float32),
              "labels": jnp.arange(3, dtype=jnp.int32)}

    # deterministic per-channel normalization params
    mean = 0.4 + 0.05 * jnp.arange(C, dtype=jnp.float32)
    std = 0.2 + 0.01 * jnp.arange(C, dtype=jnp.float32)

    # reference (plain JAX) computed up-front (kernel donates its input buffer)
    ref = (images / 255.0 - mean[None, :, None, None]) / std[None, :, None, None]

    out_images, out_target = image_transform_compose(images, target, mean, std)
    out_images = jax.block_until_ready(out_images)

    assert out_images.shape == (N, C, H, W) and out_images.dtype == jnp.float32
    assert jnp.allclose(out_images, ref, atol=1e-5, rtol=1e-5)
    # target must pass through unchanged
    assert jnp.array_equal(out_target["labels"], target["labels"])
    assert jnp.array_equal(out_target["boxes"], target["boxes"])

    print("KERNEL_OK")
</pallas_src>

<mosaic_0001>
module attributes {stable_mosaic.version = 11 : i64} {
  func.func @_affine_kernel(%arg0: i32, %arg1: i32, %arg2: memref<8x256xf32, #tpu.memory_space<vmem>>, %arg3: memref<8x1xf32, #tpu.memory_space<vmem>>, %arg4: memref<8x1xf32, #tpu.memory_space<vmem>>, %arg5: memref<8x256xf32, #tpu.memory_space<vmem>>) attributes {dimension_semantics = [#tpu.dimension_semantics<parallel>, #tpu.dimension_semantics<parallel>], iteration_bounds = array<i64: 1, 1>, scalar_prefetch = 0 : i64, scratch_operands = 0 : i64, tpu.core_type = #tpu.core_type<tc>, window_params = [{transform_indices = @transform_0, window_bounds = array<i64: 8, 256>}, {transform_indices = @transform_1, window_bounds = array<i64: 8, 1>}, {transform_indices = @transform_2, window_bounds = array<i64: 8, 1>}, {transform_indices = @transform_3, window_bounds = array<i64: 8, 256>}]} {
    %c0 = arith.constant 0 : index
    %c0_0 = arith.constant 0 : index
    %0 = vector.load %arg2[%c0, %c0_0] : memref<8x256xf32, #tpu.memory_space<vmem>>, vector<8x256xf32>
    %c0_1 = arith.constant 0 : index
    %c0_2 = arith.constant 0 : index
    %1 = vector.load %arg3[%c0_1, %c0_2] : memref<8x1xf32, #tpu.memory_space<vmem>>, vector<8x1xf32>
    %2 = vector.broadcast %1 : vector<8x1xf32> to vector<8x256xf32>
    %3 = arith.mulf %0, %2 : vector<8x256xf32>
    %c0_3 = arith.constant 0 : index
    %c0_4 = arith.constant 0 : index
    %4 = vector.load %arg4[%c0_3, %c0_4] : memref<8x1xf32, #tpu.memory_space<vmem>>, vector<8x1xf32>
    %5 = vector.broadcast %4 : vector<8x1xf32> to vector<8x256xf32>
    %6 = arith.addf %3, %5 : vector<8x256xf32>
    %c0_5 = arith.constant 0 : index
    %c0_6 = arith.constant 0 : index
    %7 = vector.load %arg5[%c0_5, %c0_6] : memref<8x256xf32, #tpu.memory_space<vmem>>, vector<8x256xf32>
    tpu.vector_store %arg5[%c0_5, %c0_6], %6 {strides = array<i32>} : memref<8x256xf32, #tpu.memory_space<vmem>>, vector<8x256xf32>,
    return
  }
  func.func @transform_0(%arg0: i32, %arg1: i32) -> (i32, i32) {
    %c0_i32 = arith.constant 0 : i32
    return %arg0, %arg1 : i32, i32
  }
  func.func @transform_1(%arg0: i32, %arg1: i32) -> (i32, i32) {
    %c0_i32 = arith.constant 0 : i32
    %c0_i32_0 = arith.constant 0 : i32
    return %arg0, %c0_i32 : i32, i32
  }
  func.func @transform_2(%arg0: i32, %arg1: i32) -> (i32, i32) {
    %c0_i32 = arith.constant 0 : i32
    %c0_i32_0 = arith.constant 0 : i32
    return %arg0, %c0_i32 : i32, i32
  }
  func.func @transform_3(%arg0: i32, %arg1: i32) -> (i32, i32) {
    %c0_i32 = arith.constant 0 : i32
    return %arg0, %arg1 : i32, i32
  }
}

</mosaic_0001>

<llo_original>
// kernel: tpu_custom_call.1
$region0: #{tpu_custom_call.1}
  #allocation0 [shape = 'u32[]', space=smem, size = 0x4, offset = 0x4, fixed_abs, tag = 'smem constant byte address 0x4 - core index']
  #allocation1 [shape = 'u32[144,128]{1,0:T(1,128)}', space=vmem, size = 0x12000, scoped, tag = 'internal scratch']
  %s0 = inlined_call_operand.hbm [shape: f32[8,256], index: 0, kind: input, shape index: {}, may-alias: {0,3}]
  %s1 = inlined_call_operand.vmem [shape: f32[8,1], index: 1, kind: input, shape index: {}]
  %s2 = inlined_call_operand.vmem [shape: f32[8,1], index: 2, kind: input, shape index: {}]
  %s3 = inlined_call_operand.hbm [shape: f32[8,256], index: 3, kind: output, shape index: {}, may-alias: {0,3}]
  %s4 = sld [smem:[#allocation0]]
  $region26: #{tpu_custom_call.1} parent=0
    _
  %s6 = ssub.s32 1, %s4
  %s7 = scalar_select 0, %s6, %s4
  $region1: #{tpu_custom_call.1} parent=0
    #allocation2 [shape = 'u8[8192]{0}', space=vmem, size = 0x2000, scoped, tag = 'input window, operand 0, single buffered']
    #allocation3 [shape = 's32[1]{0}', space=sflag, size = 0x4, scoped, tag = 'scoped memory for tpu_custom_call.1']
    #allocation4 [shape = 's32[1]{0}', space=sflag, size = 0x4, scoped, tag = 'scoped memory for tpu_custom_call.1']
    #allocation5 [shape = 'u8[8192]{0}', space=vmem, size = 0x2000, scoped, tag = 'output window, operand 0, single buffered']
    %8 = vsyncpa [#allocation3], 0
    %9 = vsyncpa [#allocation4], 0
    // Predicated region
    $region2: #{tpu_custom_call.1} parent=1 // pred_check
      _
    $region3: #{tpu_custom_call.1} parent=1 // pred_check_branch
      %11 = sbr.rel (0) target = $region5
    $region4: #{tpu_custom_call.1} parent=1 // pred_region
      %s13 = ssub.s32 256, 256
      %14 = vsyncadd [#allocation3], %s13
      %s16 = sshll.u32 [#allocation2], 4
      %s17 = int_to_ptr.vmem [resolvable:$true] %s16
      %19 = dma.hbm_to_vmem [thread:$0]  %s0, 256, %s17, [#allocation3]
    $region5: #{tpu_custom_call.1} parent=1 // pred_fallthru
      _
    // Predicated region
    $region6: #{tpu_custom_call.1} parent=1 // pred_check
      _
    $region7: #{tpu_custom_call.1} parent=1 // pred_check_branch
      %21 = sbr.rel (0) target = $region9
    $region8: #{tpu_custom_call.1} parent=1 // pred_region
      _
    $region9: #{tpu_custom_call.1} parent=1 // pred_fallthru
      _
    // Predicated region
    $region10: #{tpu_custom_call.1} parent=1 // pred_check
      _
    $region11: #{tpu_custom_call.1} parent=1 // pred_check_branch
      %23 = sbr.rel (0) target = $region13
    $region12: #{tpu_custom_call.1} parent=1 // pred_region
      _
    $region13: #{tpu_custom_call.1} parent=1 // pred_fallthru
      _
    // Predicated region
    $region14: #{tpu_custom_call.1} parent=1 // pred_check
      _
    $region15: #{tpu_custom_call.1} parent=1 // pred_check_branch
      %25 = sbr.rel (0) target = $region17
    $region16: #{tpu_custom_call.1} parent=1 // pred_region
      %26 = dma.done [#allocation3], 256
    $region17: #{tpu_custom_call.1} parent=1 // pred_fallthru
      _
    %v27 = vld [vmem:[#allocation2] sm:$0xff]
    %v28 = vld [vmem:[#allocation2 + $0x8] sm:$0xff]
    %v29 = vld [vmem:[%s1] sm:$0xff]
    %31 = vset.pattern.permute.xlu0 0
    %32 = vperm.xlu0 %31, %v29
    %v33 = vpop.permute.xlu0 %32
    %v35 = vmul.f32 %v27, %v33
    %v36 = vmul.f32 %v28, %v33
    %v37 = vld [vmem:[%s2] sm:$0xff]
    %39 = vset.pattern.permute.xlu0 0
    %40 = vperm.xlu0 %39, %v37
    %v41 = vpop.permute.xlu0 %40
    %v43 = vadd.f32 %v35, %v41
    %v44 = vadd.f32 %v36, %v41
    %45 = vst [vmem:[#allocation5] sm:$0xff] %v43
    %46 = vst [vmem:[#allocation5 + $0x8] sm:$0xff] %v44
    // Predicated region
    $region18: #{tpu_custom_call.1} parent=1 // pred_check
      _
    $region19: #{tpu_custom_call.1} parent=1 // pred_check_branch
      %48 = sbr.rel (0) target = $region21
    $region20: #{tpu_custom_call.1} parent=1 // pred_region
      %s50 = ssub.s32 256, 256
      %51 = vsyncadd [#allocation4], %s50
      %s53 = sshll.u32 [#allocation5], 4
      %s54 = int_to_ptr.vmem [resolvable:$true] %s53
      %56 = dma.vmem_to_hbm [thread:$0]  %s54, 256, %s3, [#allocation4]
    $region21: #{tpu_custom_call.1} parent=1 // pred_fallthru
      _
    // Predicated region
    $region22: #{tpu_custom_call.1} parent=1 // pred_check
      _
    $region23: #{tpu_custom_call.1} parent=1 // pred_check_branch
      %58 = sbr.rel (0) target = $region25
    $region24: #{tpu_custom_call.1} parent=1 // pred_region
      %59 = dma.done [#allocation4], 256
    $region25: #{tpu_custom_call.1} parent=1 // pred_fallthru
      _
    %60 = vsyncpa [#allocation3], 1
    %61 = vsyncpa [#allocation4], 1

</llo_original>
